<compile_context>
chip_gen: v6e
topology: v6e:2x2x1
jax: 0.10.0
libtpu: 0.0.40
codegen_flags: <defaults>
</compile_context>

<pallas_src>
import functools

import jax
import jax.numpy as jnp
from jax.experimental import pallas as pl
from jax.experimental.pallas import tpu as pltpu

_MiB = 1024 * 1024


# ---------------------------------------------------------------------------
# Hardware detection (pack width / VMEM budgets are generation dependent).
# ---------------------------------------------------------------------------
@functools.lru_cache(maxsize=1)
def _tpu_kind():
    try:
        dev = jax.devices()[0]
        if dev.platform == "tpu":
            return dev.device_kind.lower()
    except Exception:
        pass
    return ""


def _has_wide_mxu():
    # v6e / v7x: 2x256^2 MXU.  v2-v5 (incl. v5e/v5p): 128-wide MXU.
    kind = _tpu_kind()
    return not any(tag in kind for tag in ("v2", "v3", "v4", "v5"))


def _is_v7():
    return "v7" in _tpu_kind()


def default_pack():
    return 8 if _has_wide_mxu() else 4


# ---------------------------------------------------------------------------
# Kernel
# ---------------------------------------------------------------------------
def _rnd_mlp_kernel(x_ref, w1_ref, b1_ref, w2_ref, b2_ref, w3_ref, b3_ref, o_ref):
    # bf16 matmuls on the MXU with f32 accumulation; bias/ReLU in f32.
    x = x_ref[...].astype(jnp.bfloat16)
    # Layer 1: Linear + ReLU   (packed: (tb, p*in) @ (p*in, p*32))
    h1 = jnp.dot(x, w1_ref[...], preferred_element_type=jnp.float32) + b1_ref[...]
    h1 = jnp.maximum(h1, 0.0).astype(jnp.bfloat16)
    # Layer 2: Linear + ReLU   (packed: (tb, p*32) @ (p*32, p*32) -> dense MXU tile)
    h2 = jnp.dot(h1, w2_ref[...], preferred_element_type=jnp.float32) + b2_ref[...]
    h2 = jnp.maximum(h2, 0.0).astype(jnp.bfloat16)
    # Layer 3: Linear (no activation)   (packed: (tb, p*32) @ (p*32, p*out))
    out = jnp.dot(h2, w3_ref[...], preferred_element_type=jnp.float32) + b3_ref[...]
    o_ref[...] = out.astype(o_ref.dtype)


# ---------------------------------------------------------------------------
# One-time weight packing (call once, reuse across forward calls)
# ---------------------------------------------------------------------------
def _block_diag_repeat(w, p):
    # kron(I_p, w): block-diagonal with p copies of w.  Off blocks are exact
    # zeros, so the packed matmul equals p independent matmuls.
    return jnp.kron(jnp.eye(p, dtype=w.dtype), w)


def pack_rnd_params(params, pack=None):
    """Pack + bf16-cast the predictor weights ONCE; reuse across calls."""
    if pack is None:
        pack = default_pack()
    packed = {
        "w1": _block_diag_repeat(params["w1"], pack).astype(jnp.bfloat16),
        "b1": jnp.tile(params["b1"].astype(jnp.float32), (1, pack)),
        "w2": _block_diag_repeat(params["w2"], pack).astype(jnp.bfloat16),
        "b2": jnp.tile(params["b2"].astype(jnp.float32), (1, pack)),
        "w3": _block_diag_repeat(params["w3"], pack).astype(jnp.bfloat16),
        "b3": jnp.tile(params["b3"].astype(jnp.float32), (1, pack)),
    }
    return packed, pack


# ---------------------------------------------------------------------------
# Forward wrapper
# ---------------------------------------------------------------------------
def rnd_network_forward(state, packed_params, pack, *, block_rows=None):
    """Fused RND predictor MLP as a single Pallas kernel.

    state:         (B, input_dim) float32
    packed_params: output of pack_rnd_params (bf16 block-diagonal weights)
    pack:          batch-packing factor used when packing the weights
    """
    B, input_dim = state.shape
    n_in = packed_params["w1"].shape[0]
    n_hid = packed_params["w2"].shape[1]
    n_out = packed_params["w3"].shape[1]
    assert n_in == pack * input_dim, "packed params do not match state/pack"
    out_dim = n_out // pack

    # ---- batch packing: (B, in) -> (Bp, pack*in) (free row-major view) ----
    B_pad = pl.cdiv(B, pack) * pack
    if B_pad != B:
        state = jnp.pad(state, ((0, B_pad - B), (0, 0)))
    Bp = B_pad // pack
    x = state.reshape(Bp, n_in)

    # ---- per-generation tile sizing with an explicit VMEM budget ----
    is_v7 = _is_v7()
    # Live VMEM per packed row: x tile (f32, double-buffered) + its bf16 copy,
    # h1/h2 intermediates (f32 + bf16), out tile (f32, double-buffered).
    per_row_bytes = (2 * n_in * 4 + n_in * 2
                     + 2 * n_hid * (4 + 2)
                     + 2 * n_out * 4)
    weight_bytes = (2 * 2 * (n_in * n_hid + n_hid * n_hid + n_hid * n_out)
                    + 4 * (2 * n_hid + n_out))
    vmem_phys = (64 if is_v7 else 128) * _MiB
    budget = min(vmem_phys - 16 * _MiB, (48 if is_v7 else 80) * _MiB)
    max_rows = 8192  # long MXU streams / few grid steps, still VMEM-safe on v7x

    if block_rows is None:
        block_rows = max(512, (budget - weight_bytes) // per_row_bytes)
        block_rows = int(min(block_rows, max_rows))
    block_rows = max(8, (int(block_rows) // 8) * 8)

    # v7x has 2 TensorCores: keep >=4 grid steps so the parallel axis shards.
    if is_v7 and Bp >= 64:
        per_core = ((-(-Bp // 4) + 7) // 8) * 8
        block_rows = min(block_rows, per_core)

    if block_rows >= Bp:
        block_rows = Bp            # single full-extent block (tiny batches)
        grid_rows = 1
        Bp_pad = Bp
    else:
        grid_rows = pl.cdiv(Bp, block_rows)
        Bp_pad = grid_rows * block_rows
        if Bp_pad != Bp:
            # Pad so every grid step sees a full tile (sliced off below).
            x = jnp.pad(x, ((0, Bp_pad - Bp), (0, 0)))

    vmem_limit = per_row_bytes * block_rows + weight_bytes + 8 * _MiB
    vmem_limit = int(min(max(vmem_limit, 32 * _MiB), vmem_phys - 8 * _MiB))

    # Weights/biases: whole array is one block, same block for every grid step.
    full = lambda shape: pl.BlockSpec(shape, lambda i: (0, 0))

    out_packed = pl.pallas_call(
        _rnd_mlp_kernel,
        out_shape=jax.ShapeDtypeStruct((Bp_pad, n_out), state.dtype),
        grid_spec=pltpu.PrefetchScalarGridSpec(
            num_scalar_prefetch=0,
            grid=(grid_rows,),
            in_specs=[
                pl.BlockSpec((block_rows, n_in), lambda i: (i, 0)),
                full((n_in, n_hid)),
                full((1, n_hid)),
                full((n_hid, n_hid)),
                full((1, n_hid)),
                full((n_hid, n_out)),
                full((1, n_out)),
            ],
            out_specs=pl.BlockSpec((block_rows, n_out), lambda i: (i, 0)),
        ),
        compiler_params=pltpu.CompilerParams(
            dimension_semantics=("parallel",),
            vmem_limit_bytes=vmem_limit,
        ),
    )(x, packed_params["w1"], packed_params["b1"],
      packed_params["w2"], packed_params["b2"],
      packed_params["w3"], packed_params["b3"])

    # Unpack: (Bp_pad, pack*out) -> (Bp_pad*pack, out) (free view), drop padding.
    return out_packed.reshape(Bp_pad * pack, out_dim)[:B]


# ---------------------------------------------------------------------------
# Params / references
# ---------------------------------------------------------------------------
def init_rnd_params(key, input_dim, output_dim, hidden=32):
    """Deterministic parameter init (Kaiming-uniform-like, PyTorch-shaped)."""
    k1, k2, k3, k4, k5, k6 = jax.random.split(key, 6)

    def linear(kw, kb, fan_in, fan_out):
        bound = 1.0 / jnp.sqrt(fan_in)
        # Stored as (in, out) == W.T relative to PyTorch's (out, in).
        w = jax.random.uniform(kw, (fan_in, fan_out), jnp.float32, -bound, bound)
        b = jax.random.uniform(kb, (1, fan_out), jnp.float32, -bound, bound)
        return w, b

    w1, b1 = linear(k1, k2, input_dim, hidden)
    w2, b2 = linear(k3, k4, hidden, hidden)
    w3, b3 = linear(k5, k6, hidden, output_dim)
    return {"w1": w1, "b1": b1, "w2": w2, "b2": b2, "w3": w3, "b3": b3}


def _reference_forward_f32(state, params):
    h1 = jnp.maximum(state @ params["w1"] + params["b1"], 0.0)
    h2 = jnp.maximum(h1 @ params["w2"] + params["b2"], 0.0)
    return h2 @ params["w3"] + params["b3"]


def _reference_forward_bf16(state, params):
    # Mirrors the kernel's numerics: bf16 operands, f32 accumulation.
    def mm(a, w):
        return jnp.dot(a.astype(jnp.bfloat16), w.astype(jnp.bfloat16),
                       preferred_element_type=jnp.float32)
    h1 = jnp.maximum(mm(state, params["w1"]) + params["b1"], 0.0)
    h2 = jnp.maximum(mm(h1, params["w2"]) + params["b2"], 0.0)
    return mm(h2, params["w3"]) + params["b3"]


if __name__ == "__main__":
    key = jax.random.PRNGKey(0)
    k_params, k_state = jax.random.split(key)

    batch, input_dim, output_dim = 8, 16, 8
    params = init_rnd_params(k_params, input_dim, output_dim)
    packed, pack = pack_rnd_params(params)   # one-time packing, reused below

    state = jax.random.normal(k_state, (batch, input_dim), jnp.float32)
    out = jax.block_until_ready(rnd_network_forward(state, packed, pack))
    assert out.shape == (batch, output_dim)

    # Tight check vs a bf16-emulated reference (same numerics as the kernel),
    # loose check vs the f32 reference (bf16 matmuls trade a little precision).
    ref_bf16 = _reference_forward_bf16(state, params)
    ref_f32 = _reference_forward_f32(state, params)
    assert jnp.allclose(out, ref_bf16, atol=1e-2, rtol=1e-2)
    assert jnp.allclose(out, ref_f32, atol=1e-1, rtol=1e-1)

    # Larger batch exercises the multi-step grid / padded-tail path.
    big_state = jax.random.normal(k_state, (5000, input_dim), jnp.float32)
    big_out = jax.block_until_ready(rnd_network_forward(big_state, packed, pack))
    assert big_out.shape == (5000, output_dim)
    big_ref_bf16 = _reference_forward_bf16(big_state, params)
    big_ref_f32 = _reference_forward_f32(big_state, params)
    assert jnp.allclose(big_out, big_ref_bf16, atol=1e-2, rtol=1e-2)
    assert jnp.allclose(big_out, big_ref_f32, atol=1e-1, rtol=1e-1)

    print("KERNEL_OK")
</pallas_src>

<mosaic_0001>
module attributes {stable_mosaic.version = 11 : i64} {
  func.func @_rnd_mlp_kernel(%arg0: i32, %arg1: memref<1x128xf32, #tpu.memory_space<vmem>>, %arg2: memref<128x256xbf16, #tpu.memory_space<vmem>>, %arg3: memref<1x256xf32, #tpu.memory_space<vmem>>, %arg4: memref<256x256xbf16, #tpu.memory_space<vmem>>, %arg5: memref<1x256xf32, #tpu.memory_space<vmem>>, %arg6: memref<256x64xbf16, #tpu.memory_space<vmem>>, %arg7: memref<1x64xf32, #tpu.memory_space<vmem>>, %arg8: memref<1x64xf32, #tpu.memory_space<vmem>>) attributes {dimension_semantics = [#tpu.dimension_semantics<parallel>], iteration_bounds = array<i64: 1>, scalar_prefetch = 0 : i64, scratch_operands = 0 : i64, tpu.core_type = #tpu.core_type<tc>, window_params = [{transform_indices = @transform_0, window_bounds = array<i64: 1, 128>}, {pipeline_mode = #tpu.pipeline_mode<synchronous>, transform_indices = @transform_1, window_bounds = array<i64: 128, 256>}, {pipeline_mode = #tpu.pipeline_mode<synchronous>, transform_indices = @transform_2, window_bounds = array<i64: 1, 256>}, {pipeline_mode = #tpu.pipeline_mode<synchronous>, transform_indices = @transform_3, window_bounds = array<i64: 256, 256>}, {pipeline_mode = #tpu.pipeline_mode<synchronous>, transform_indices = @transform_4, window_bounds = array<i64: 1, 256>}, {pipeline_mode = #tpu.pipeline_mode<synchronous>, transform_indices = @transform_5, window_bounds = array<i64: 256, 64>}, {pipeline_mode = #tpu.pipeline_mode<synchronous>, transform_indices = @transform_6, window_bounds = array<i64: 1, 64>}, {transform_indices = @transform_7, window_bounds = array<i64: 1, 64>}]} {
    %c0 = arith.constant 0 : index
    %c0_0 = arith.constant 0 : index
    %0 = vector.load %arg1[%c0, %c0_0] : memref<1x128xf32, #tpu.memory_space<vmem>>, vector<1x128xf32>
    %1 = arith.truncf %0 : vector<1x128xf32> to vector<1x128xbf16>
    %c0_1 = arith.constant 0 : index
    %c0_2 = arith.constant 0 : index
    %2 = vector.load %arg2[%c0_1, %c0_2] : memref<128x256xbf16, #tpu.memory_space<vmem>>, vector<128x256xbf16>
    %cst = arith.constant dense<0.000000e+00> : vector<1x256xf32>
    %3 = tpu.matmul %1, %2, %cst {dimension_numbers = #tpu.dot_dimension_numbers<[1], [0], [0], [1], [0, 0, 1, 1], [], []>} : vector<1x128xbf16>, vector<128x256xbf16>, vector<1x256xf32> -> vector<1x256xf32>
    %c0_3 = arith.constant 0 : index
    %c0_4 = arith.constant 0 : index
    %4 = vector.load %arg3[%c0_3, %c0_4] : memref<1x256xf32, #tpu.memory_space<vmem>>, vector<1x256xf32>
    %5 = arith.addf %3, %4 : vector<1x256xf32>
    %cst_5 = arith.constant 0.000000e+00 : f32
    %6 = vector.broadcast %cst_5 : f32 to vector<1x256xf32>
    %7 = arith.maximumf %5, %6 : vector<1x256xf32>
    %8 = arith.truncf %7 : vector<1x256xf32> to vector<1x256xbf16>
    %c0_6 = arith.constant 0 : index
    %c0_7 = arith.constant 0 : index
    %9 = vector.load %arg4[%c0_6, %c0_7] : memref<256x256xbf16, #tpu.memory_space<vmem>>, vector<256x256xbf16>
    %cst_8 = arith.constant dense<0.000000e+00> : vector<1x256xf32>
    %10 = tpu.matmul %8, %9, %cst_8 {dimension_numbers = #tpu.dot_dimension_numbers<[1], [0], [0], [1], [0, 0, 1, 1], [], []>} : vector<1x256xbf16>, vector<256x256xbf16>, vector<1x256xf32> -> vector<1x256xf32>
    %c0_9 = arith.constant 0 : index
    %c0_10 = arith.constant 0 : index
    %11 = vector.load %arg5[%c0_9, %c0_10] : memref<1x256xf32, #tpu.memory_space<vmem>>, vector<1x256xf32>
    %12 = arith.addf %10, %11 : vector<1x256xf32>
    %cst_11 = arith.constant 0.000000e+00 : f32
    %13 = vector.broadcast %cst_11 : f32 to vector<1x256xf32>
    %14 = arith.maximumf %12, %13 : vector<1x256xf32>
    %15 = arith.truncf %14 : vector<1x256xf32> to vector<1x256xbf16>
    %c0_12 = arith.constant 0 : index
    %c0_13 = arith.constant 0 : index
    %16 = vector.load %arg6[%c0_12, %c0_13] : memref<256x64xbf16, #tpu.memory_space<vmem>>, vector<256x64xbf16>
    %cst_14 = arith.constant dense<0.000000e+00> : vector<1x64xf32>
    %17 = tpu.matmul %15, %16, %cst_14 {dimension_numbers = #tpu.dot_dimension_numbers<[1], [0], [0], [1], [0, 0, 1, 1], [], []>} : vector<1x256xbf16>, vector<256x64xbf16>, vector<1x64xf32> -> vector<1x64xf32>
    %c0_15 = arith.constant 0 : index
    %c0_16 = arith.constant 0 : index
    %18 = vector.load %arg7[%c0_15, %c0_16] : memref<1x64xf32, #tpu.memory_space<vmem>>, vector<1x64xf32>
    %19 = arith.addf %17, %18 : vector<1x64xf32>
    %c0_17 = arith.constant 0 : index
    %c0_18 = arith.constant 0 : index
    %20 = vector.load %arg8[%c0_17, %c0_18] : memref<1x64xf32, #tpu.memory_space<vmem>>, vector<1x64xf32>
    tpu.vector_store %arg8[%c0_17, %c0_18], %19 {strides = array<i32>} : memref<1x64xf32, #tpu.memory_space<vmem>>, vector<1x64xf32>,
    return
  }
  func.func @transform_0(%arg0: i32) -> (i32, i32) {
    %c0_i32 = arith.constant 0 : i32
    %c0_i32_0 = arith.constant 0 : i32
    return %arg0, %c0_i32 : i32, i32
  }
  func.func @transform_1(%arg0: i32) -> (i32, i32) {
    %c0_i32 = arith.constant 0 : i32
    %c0_i32_0 = arith.constant 0 : i32
    %c0_i32_1 = arith.constant 0 : i32
    return %c0_i32, %c0_i32_0 : i32, i32
  }
  func.func @transform_2(%arg0: i32) -> (i32, i32) {
    %c0_i32 = arith.constant 0 : i32
    %c0_i32_0 = arith.constant 0 : i32
    %c0_i32_1 = arith.constant 0 : i32
    return %c0_i32, %c0_i32_0 : i32, i32
  }
  func.func @transform_3(%arg0: i32) -> (i32, i32) {
    %c0_i32 = arith.constant 0 : i32
    %c0_i32_0 = arith.constant 0 : i32
    %c0_i32_1 = arith.constant 0 : i32
    return %c0_i32, %c0_i32_0 : i32, i32
  }
  func.func @transform_4(%arg0: i32) -> (i32, i32) {
    %c0_i32 = arith.constant 0 : i32
    %c0_i32_0 = arith.constant 0 : i32
    %c0_i32_1 = arith.constant 0 : i32
    return %c0_i32, %c0_i32_0 : i32, i32
  }
  func.func @transform_5(%arg0: i32) -> (i32, i32) {
    %c0_i32 = arith.constant 0 : i32
    %c0_i32_0 = arith.constant 0 : i32
    %c0_i32_1 = arith.constant 0 : i32
    return %c0_i32, %c0_i32_0 : i32, i32
  }
  func.func @transform_6(%arg0: i32) -> (i32, i32) {
    %c0_i32 = arith.constant 0 : i32
    %c0_i32_0 = arith.constant 0 : i32
    %c0_i32_1 = arith.constant 0 : i32
    return %c0_i32, %c0_i32_0 : i32, i32
  }
  func.func @transform_7(%arg0: i32) -> (i32, i32) {
    %c0_i32 = arith.constant 0 : i32
    %c0_i32_0 = arith.constant 0 : i32
    return %arg0, %c0_i32 : i32, i32
  }
}

</mosaic_0001>

<llo_original>
// kernel: tpu_custom_call.1
$region0: #{tpu_custom_call.1}
  #allocation0 [shape = 'u32[]', space=smem, size = 0x4, offset = 0x4, fixed_abs, tag = 'smem constant byte address 0x4 - core index']
  #allocation1 [shape = 'u32[144,128]{1,0:T(1,128)}', space=vmem, size = 0x12000, scoped, tag = 'internal scratch']
  %s0 = inlined_call_operand.vmem [shape: f32[1,128], index: 0, kind: input, shape index: {}]
  %s1 = inlined_call_operand.vmem [shape: bf16[128,256], index: 1, kind: input, shape index: {}]
  %s2 = inlined_call_operand.vmem [shape: f32[1,256], index: 2, kind: input, shape index: {}]
  %s3 = inlined_call_operand.hbm [shape: bf16[256,256], index: 3, kind: input, shape index: {}]
  %s4 = inlined_call_operand.vmem [shape: f32[1,256], index: 4, kind: input, shape index: {}]
  %s5 = inlined_call_operand.vmem [shape: bf16[256,64], index: 5, kind: input, shape index: {}]
  %s6 = inlined_call_operand.vmem [shape: f32[1,64], index: 6, kind: input, shape index: {}]
  %s7 = inlined_call_operand.hbm [shape: f32[1,64], index: 7, kind: output, shape index: {}]
  %s8 = sld [smem:[#allocation0]]
  $region42: #{tpu_custom_call.1} parent=0
    _
  %s10 = ssub.s32 1, %s8
  %s11 = scalar_select 0, %s10, %s8
  $region1: #{tpu_custom_call.1} parent=0
    #allocation2 [shape = 'u8[131072]{0}', space=vmem, size = 0x20000, scoped, tag = 'input window, operand 3, single buffered']
    #allocation3 [shape = 's32[1]{0}', space=sflag, size = 0x4, scoped, tag = 'scoped memory for tpu_custom_call.1']
    #allocation4 [shape = 's32[1]{0}', space=sflag, size = 0x4, scoped, tag = 'scoped memory for tpu_custom_call.1']
    #allocation5 [shape = 'u8[512]{0}', space=vmem, size = 0x400, scoped, tag = 'output window, operand 0, single buffered']
    %12 = vsyncpa [#allocation3], 0
    %13 = vsyncpa [#allocation4], 0
    // Predicated region
    $region2: #{tpu_custom_call.1} parent=1 // pred_check
      _
    $region3: #{tpu_custom_call.1} parent=1 // pred_check_branch
      %15 = sbr.rel (0) target = $region5
    $region4: #{tpu_custom_call.1} parent=1 // pred_region
      _
    $region5: #{tpu_custom_call.1} parent=1 // pred_fallthru
      _
    // Predicated region
    $region6: #{tpu_custom_call.1} parent=1 // pred_check
      _
    $region7: #{tpu_custom_call.1} parent=1 // pred_check_branch
      %17 = sbr.rel (0) target = $region9
    $region8: #{tpu_custom_call.1} parent=1 // pred_region
      _
    $region9: #{tpu_custom_call.1} parent=1 // pred_fallthru
      _
    // Predicated region
    $region10: #{tpu_custom_call.1} parent=1 // pred_check
      _
    $region11: #{tpu_custom_call.1} parent=1 // pred_check_branch
      %19 = sbr.rel (0) target = $region13
    $region12: #{tpu_custom_call.1} parent=1 // pred_region
      _
    $region13: #{tpu_custom_call.1} parent=1 // pred_fallthru
      _
    // Predicated region
    $region14: #{tpu_custom_call.1} parent=1 // pred_check
      _
    $region15: #{tpu_custom_call.1} parent=1 // pred_check_branch
      %21 = sbr.rel (0) target = $region17
    $region16: #{tpu_custom_call.1} parent=1 // pred_region
      %s23 = ssub.s32 4096, 4096
      %24 = vsyncadd [#allocation3], %s23
      %s25 = sshll.u32 [#allocation2], 4
      %s26 = int_to_ptr.vmem [resolvable:$true] %s25
      %31 = dma.hbm_to_vmem [thread:$0]  %s3, 4096, %s26, [#allocation3], 128, 128, 8
    $region17: #{tpu_custom_call.1} parent=1 // pred_fallthru
      _
    // Predicated region
    $region18: #{tpu_custom_call.1} parent=1 // pred_check
      _
    $region19: #{tpu_custom_call.1} parent=1 // pred_check_branch
      %33 = sbr.rel (0) target = $region21
    $region20: #{tpu_custom_call.1} parent=1 // pred_region
      _
    $region21: #{tpu_custom_call.1} parent=1 // pred_fallthru
      _
    // Predicated region
    $region22: #{tpu_custom_call.1} parent=1 // pred_check
      _
    $region23: #{tpu_custom_call.1} parent=1 // pred_check_branch
      %35 = sbr.rel (0) target = $region25
    $region24: #{tpu_custom_call.1} parent=1 // pred_region
      _
    $region25: #{tpu_custom_call.1} parent=1 // pred_fallthru
      _
    // Predicated region
    $region26: #{tpu_custom_call.1} parent=1 // pred_check
      _
    $region27: #{tpu_custom_call.1} parent=1 // pred_check_branch
      %37 = sbr.rel (0) target = $region29
    $region28: #{tpu_custom_call.1} parent=1 // pred_region
      _
    $region29: #{tpu_custom_call.1} parent=1 // pred_fallthru
      _
    // Predicated region
    $region30: #{tpu_custom_call.1} parent=1 // pred_check
      _
    $region31: #{tpu_custom_call.1} parent=1 // pred_check_branch
      %39 = sbr.rel (0) target = $region33
    $region32: #{tpu_custom_call.1} parent=1 // pred_region
      %40 = dma.done [#allocation3], 4096
    $region33: #{tpu_custom_call.1} parent=1 // pred_fallthru
      _
    %v42 = vld [vmem:[%s0] sm:$0x1]
    %v43 = vpack.c.bf16 %v42, %v42
    %v44 = vld [vmem:[%s1] sm:$0xff]
    %v45 = vld [vmem:[%s1 + $0x8] sm:$0xff]
    %v46 = vld [vmem:[%s1 + $0x10] sm:$0xff]
    %v47 = vld [vmem:[%s1 + $0x18] sm:$0xff]
    %v48 = vld [vmem:[%s1 + $0x20] sm:$0xff]
    %v49 = vld [vmem:[%s1 + $0x28] sm:$0xff]
    %v50 = vld [vmem:[%s1 + $0x30] sm:$0xff]
    %v51 = vld [vmem:[%s1 + $0x38] sm:$0xff]
    %v52 = vld [vmem:[%s1 + $0x40] sm:$0xff]
    %v53 = vld [vmem:[%s1 + $0x48] sm:$0xff]
    %v54 = vld [vmem:[%s1 + $0x50] sm:$0xff]
    %v55 = vld [vmem:[%s1 + $0x58] sm:$0xff]
    %v56 = vld [vmem:[%s1 + $0x60] sm:$0xff]
    %v57 = vld [vmem:[%s1 + $0x68] sm:$0xff]
    %v58 = vld [vmem:[%s1 + $0x70] sm:$0xff]
    %v59 = vld [vmem:[%s1 + $0x78] sm:$0xff]
    %v60 = vld [vmem:[%s2] sm:$0x3]
    %v77 = vunpack.c.l.b16 %v44
    %v78 = vunpack.c.h.b16 %v44
    %v79 = vunpack.c.l.b16 %v45
    %v80 = vunpack.c.h.b16 %v45
    %v81 = vunpack.c.l.b16 %v46
    %v82 = vunpack.c.h.b16 %v46
    %v83 = vunpack.c.l.b16 %v47
    %v84 = vunpack.c.h.b16 %v47
    %v85 = vunpack.c.l.b16 %v48
    %v86 = vunpack.c.h.b16 %v48
    %v87 = vunpack.c.l.b16 %v49
    %v88 = vunpack.c.h.b16 %v49
    %v89 = vunpack.c.l.b16 %v50
    %v90 = vunpack.c.h.b16 %v50
    %v91 = vunpack.c.l.b16 %v51
    %v92 = vunpack.c.h.b16 %v51
    %v93 = vunpack.c.l.b16 %v52
    %v94 = vunpack.c.h.b16 %v52
    %v95 = vunpack.c.l.b16 %v53
    %v96 = vunpack.c.h.b16 %v53
    %v97 = vunpack.c.l.b16 %v54
    %v98 = vunpack.c.h.b16 %v54
    %v99 = vunpack.c.l.b16 %v55
    %v100 = vunpack.c.h.b16 %v55
    %v101 = vunpack.c.l.b16 %v56
    %v102 = vunpack.c.h.b16 %v56
    %v103 = vunpack.c.l.b16 %v57
    %v104 = vunpack.c.h.b16 %v57
    %v105 = vunpack.c.l.b16 %v58
    %v106 = vunpack.c.h.b16 %v58
    %v107 = vunpack.c.l.b16 %v59
    %v108 = vunpack.c.h.b16 %v59
    %v109 = vpack.c.b16 %v79, %v77
    %v110 = vpack.c.b16 %v80, %v78
    %v111 = vpack.c.b16 %v83, %v81
    %v112 = vpack.c.b16 %v84, %v82
    %v113 = vpack.c.b16 %v87, %v85
    %v114 = vpack.c.b16 %v88, %v86
    %v115 = vpack.c.b16 %v91, %v89
    %v116 = vpack.c.b16 %v92, %v90
    %v117 = vpack.c.b16 %v95, %v93
    %v118 = vpack.c.b16 %v96, %v94
    %v119 = vpack.c.b16 %v99, %v97
    %v120 = vpack.c.b16 %v100, %v98
    %v121 = vpack.c.b16 %v103, %v101
    %v122 = vpack.c.b16 %v104, %v102
    %v123 = vpack.c.b16 %v107, %v105
    %v124 = vpack.c.b16 %v108, %v106
    %v142 = vlaneseq
    %v143 = vshrl.u32 %v142, 7
    %v144 = vsub.s32 0, %v143
    %v145 = vrot.slane %v60, %v144
    %v146 = vlaneseq
    %v147 = vshrl.u32 %v146, 7
    %v148 = vsub.s32 1, %v147
    %v149 = vrot.slane %v60, %v148
    %152 = vmatprep.subr.bf16.mxu0 %v124
    %153 = vmatpush1.bf16.msra.mxu0 %v123
    %154 = vmatprep.subr.bf16.mxu0 %v122
    %155 = vmatpush1.bf16.msra.mxu0 %v121
    %156 = vmatprep.subr.bf16.mxu0 %v120
    %157 = vmatpush1.bf16.msra.mxu0 %v119
    %158 = vmatprep.subr.bf16.mxu0 %v118
    %159 = vmatpush1.bf16.msra.mxu0 %v117
    %160 = vmatprep.subr.bf16.mxu0 %v116
    %161 = vmatpush1.bf16.msra.mxu0 %v115
    %162 = vmatprep.subr.bf16.mxu0 %v114
    %163 = vmatpush1.bf16.msra.mxu0 %v113
    %164 = vmatprep.subr.bf16.mxu0 %v112
    %165 = vmatpush1.bf16.msra.mxu0 %v111
    %166 = vmatprep.subr.bf16.mxu0 %v110
    %167 = vmatpush1.bf16.msra.mxu0 %v109
    %168 = vmatprep.subr.bf16.mxu0 0
    %169 = vmatpush2.bf16.msra.mxu0 0
    %170 = vmatprep.subr.bf16.mxu0 0
    %171 = vmatpush2.bf16.msra.mxu0 0
    %172 = vmatprep.subr.bf16.mxu0 0
    %173 = vmatpush2.bf16.msra.mxu0 0
    %174 = vmatprep.subr.bf16.mxu0 0
    %175 = vmatpush2.bf16.msra.mxu0 0
    %176 = vmatprep.subr.bf16.mxu0 0
    %177 = vmatpush2.bf16.msra.mxu0 0
    %178 = vmatprep.subr.bf16.mxu0 0
    %179 = vmatpush2.bf16.msra.mxu0 0
    %180 = vmatprep.subr.bf16.mxu0 0
    %181 = vmatpush2.bf16.msra.mxu0 0
    %182 = vmatprep.subr.bf16.mxu0 0
    %183 = vmatpush2.bf16.msra.mxu0 0
    %184 = vmatprep.mubr.bf16.mxu0 0
    %185 = vmatmul.mubr.bf16.gmra.mxu0 %v43
    %v186 = vpop.f32.mrf.mxu0
    %v187 = vadd.f32 %v145, %v186
    %v188 = vpop.f32.mrf.mxu0
    %v189 = vadd.f32 %v149, %v188
    %v190 = vpop.f32.mrf.mxu0
    %v191 = vpop.f32.mrf.mxu0
    %192 = vdwg.mxu0
    %v193 = vmax.f32 %v187, 0.0
    %v194 = vmax.f32 %v189, 0.0
    %v195 = vpack.c.bf16 %v193, %v193
    %v196 = vpack.c.bf16 %v194, %v194
    %v197 = vld [vmem:[#allocation2] sm:$0xff]
    %v198 = vld [vmem:[#allocation2 + $0x8] sm:$0xff]
    %v199 = vld [vmem:[#allocation2 + $0x10] sm:$0xff]
    %v200 = vld [vmem:[#allocation2 + $0x18] sm:$0xff]
    %v201 = vld [vmem:[#allocation2 + $0x20] sm:$0xff]
    %v202 = vld [vmem:[#allocation2 + $0x28] sm:$0xff]
    %v203 = vld [vmem:[#allocation2 + $0x30] sm:$0xff]
    %v204 = vld [vmem:[#allocation2 + $0x38] sm:$0xff]
    %v205 = vld [vmem:[#allocation2 + $0x40] sm:$0xff]
    %v206 = vld [vmem:[#allocation2 + $0x48] sm:$0xff]
    %v207 = vld [vmem:[#allocation2 + $0x50] sm:$0xff]
    %v208 = vld [vmem:[#allocation2 + $0x58] sm:$0xff]
    %v209 = vld [vmem:[#allocation2 + $0x60] sm:$0xff]
    %v210 = vld [vmem:[#allocation2 + $0x68] sm:$0xff]
    %v211 = vld [vmem:[#allocation2 + $0x70] sm:$0xff]
    %v212 = vld [vmem:[#allocation2 + $0x78] sm:$0xff]
    %v213 = vld [vmem:[#allocation2 + $0x80] sm:$0xff]
    %v214 = vld [vmem:[#allocation2 + $0x88] sm:$0xff]
    %v215 = vld [vmem:[#allocation2 + $0x90] sm:$0xff]
    %v216 = vld [vmem:[#allocation2 + $0x98] sm:$0xff]
    %v217 = vld [vmem:[#allocation2 + $0xa0] sm:$0xff]
    %v218 = vld [vmem:[#allocation2 + $0xa8] sm:$0xff]
    %v219 = vld [vmem:[#allocation2 + $0xb0] sm:$0xff]
    %v220 = vld [vmem:[#allocation2 + $0xb8] sm:$0xff]
    %v221 = vld [vmem:[#allocation2 + $0xc0] sm:$0xff]
    %v222 = vld [vmem:[#allocation2 + $0xc8] sm:$0xff]
    %v223 = vld [vmem:[#allocation2 + $0xd0] sm:$0xff]
    %v224 = vld [vmem:[#allocation2 + $0xd8] sm:$0xff]
    %v225 = vld [vmem:[#allocation2 + $0xe0] sm:$0xff]
    %v226 = vld [vmem:[#allocation2 + $0xe8] sm:$0xff]
    %v227 = vld [vmem:[#allocation2 + $0xf0] sm:$0xff]
    %v228 = vld [vmem:[#allocation2 + $0xf8] sm:$0xff]
    %v229 = vld [vmem:[%s4] sm:$0x3]
    %v262 = vunpack.c.l.b16 %v197
    %v263 = vunpack.c.h.b16 %v197
    %v264 = vunpack.c.l.b16 %v198
    %v265 = vunpack.c.h.b16 %v198
    %v266 = vunpack.c.l.b16 %v199
    %v267 = vunpack.c.h.b16 %v199
    %v268 = vunpack.c.l.b16 %v200
    %v269 = vunpack.c.h.b16 %v200
    %v270 = vunpack.c.l.b16 %v201
    %v271 = vunpack.c.h.b16 %v201
    %v272 = vunpack.c.l.b16 %v202
    %v273 = vunpack.c.h.b16 %v202
    %v274 = vunpack.c.l.b16 %v203
    %v275 = vunpack.c.h.b16 %v203
    %v276 = vunpack.c.l.b16 %v204
    %v277 = vunpack.c.h.b16 %v204
    %v278 = vunpack.c.l.b16 %v205
    %v279 = vunpack.c.h.b16 %v205
    %v280 = vunpack.c.l.b16 %v206
    %v281 = vunpack.c.h.b16 %v206
    %v282 = vunpack.c.l.b16 %v207
    %v283 = vunpack.c.h.b16 %v207
    %v284 = vunpack.c.l.b16 %v208
    %v285 = vunpack.c.h.b16 %v208
    %v286 = vunpack.c.l.b16 %v209
    %v287 = vunpack.c.h.b16 %v209
    %v288 = vunpack.c.l.b16 %v210
    %v289 = vunpack.c.h.b16 %v210
    %v290 = vunpack.c.l.b16 %v211
    %v291 = vunpack.c.h.b16 %v211
    %v292 = vunpack.c.l.b16 %v212
    %v293 = vunpack.c.h.b16 %v212
    %v294 = vunpack.c.l.b16 %v213
    %v295 = vunpack.c.h.b16 %v213
    %v296 = vunpack.c.l.b16 %v214
    %v297 = vunpack.c.h.b16 %v214
    %v298 = vunpack.c.l.b16 %v215
    %v299 = vunpack.c.h.b16 %v215
    %v300 = vunpack.c.l.b16 %v216
    %v301 = vunpack.c.h.b16 %v216
    %v302 = vunpack.c.l.b16 %v217
    %v303 = vunpack.c.h.b16 %v217
    %v304 = vunpack.c.l.b16 %v218
    %v305 = vunpack.c.h.b16 %v218
    %v306 = vunpack.c.l.b16 %v219
    %v307 = vunpack.c.h.b16 %v219
    %v308 = vunpack.c.l.b16 %v220
    %v309 = vunpack.c.h.b16 %v220
    %v310 = vunpack.c.l.b16 %v221
    %v311 = vunpack.c.h.b16 %v221
    %v312 = vunpack.c.l.b16 %v222
    %v313 = vunpack.c.h.b16 %v222
    %v314 = vunpack.c.l.b16 %v223
    %v315 = vunpack.c.h.b16 %v223
    %v316 = vunpack.c.l.b16 %v224
    %v317 = vunpack.c.h.b16 %v224
    %v318 = vunpack.c.l.b16 %v225
    %v319 = vunpack.c.h.b16 %v225
    %v320 = vunpack.c.l.b16 %v226
    %v321 = vunpack.c.h.b16 %v226
    %v322 = vunpack.c.l.b16 %v227
    %v323 = vunpack.c.h.b16 %v227
    %v324 = vunpack.c.l.b16 %v228
    %v325 = vunpack.c.h.b16 %v228
    %v326 = vpack.c.b16 %v264, %v262
    %v327 = vpack.c.b16 %v265, %v263
    %v328 = vpack.c.b16 %v268, %v266
    %v329 = vpack.c.b16 %v269, %v267
    %v330 = vpack.c.b16 %v272, %v270
    %v331 = vpack.c.b16 %v273, %v271
    %v332 = vpack.c.b16 %v276, %v274
    %v333 = vpack.c.b16 %v277, %v275
    %v334 = vpack.c.b16 %v280, %v278
    %v335 = vpack.c.b16 %v281, %v279
    %v336 = vpack.c.b16 %v284, %v282
    %v337 = vpack.c.b16 %v285, %v283
    %v338 = vpack.c.b16 %v288, %v286
    %v339 = vpack.c.b16 %v289, %v287
    %v340 = vpack.c.b16 %v292, %v290
    %v341 = vpack.c.b16 %v293, %v291
    %v342 = vpack.c.b16 %v296, %v294
    %v343 = vpack.c.b16 %v297, %v295
    %v344 = vpack.c.b16 %v300, %v298
    %v345 = vpack.c.b16 %v301, %v299
    %v346 = vpack.c.b16 %v304, %v302
    %v347 = vpack.c.b16 %v305, %v303
    %v348 = vpack.c.b16 %v308, %v306
    %v349 = vpack.c.b16 %v309, %v307
    %v350 = vpack.c.b16 %v312, %v310
    %v351 = vpack.c.b16 %v313, %v311
    %v352 = vpack.c.b16 %v316, %v314
    %v353 = vpack.c.b16 %v317, %v315
    %v354 = vpack.c.b16 %v320, %v318
    %v355 = vpack.c.b16 %v321, %v319
    %v356 = vpack.c.b16 %v324, %v322
    %v357 = vpack.c.b16 %v325, %v323
    %v391 = vlaneseq
    %v392 = vshrl.u32 %v391, 7
    %v393 = vsub.s32 0, %v392
    %v394 = vrot.slane %v229, %v393
    %v395 = vlaneseq
    %v396 = vshrl.u32 %v395, 7
    %v397 = vsub.s32 1, %v396
    %v398 = vrot.slane %v229, %v397
    %401 = vmatprep.subr.bf16.mxu0 %v341
    %402 = vmatpush1.bf16.msra.mxu0 %v340
    %403 = vmatprep.subr.bf16.mxu0 %v339
    %404 = vmatpush1.bf16.msra.mxu0 %v338
    %405 = vmatprep.subr.bf16.mxu0 %v337
    %406 = vmatpush1.bf16.msra.mxu0 %v336
    %407 = vmatprep.subr.bf16.mxu0 %v335
    %408 = vmatpush1.bf16.msra.mxu0 %v334
    %409 = vmatprep.subr.bf16.mxu0 %v333
    %410 = vmatpush1.bf16.msra.mxu0 %v332
    %411 = vmatprep.subr.bf16.mxu0 %v331
    %412 = vmatpush1.bf16.msra.mxu0 %v330
    %413 = vmatprep.subr.bf16.mxu0 %v329
    %414 = vmatpush1.bf16.msra.mxu0 %v328
    %415 = vmatprep.subr.bf16.mxu0 %v327
    %416 = vmatpush1.bf16.msra.mxu0 %v326
    %417 = vmatprep.subr.bf16.mxu0 %v357
    %418 = vmatpush2.bf16.msra.mxu0 %v356
    %419 = vmatprep.subr.bf16.mxu0 %v355
    %420 = vmatpush2.bf16.msra.mxu0 %v354
    %421 = vmatprep.subr.bf16.mxu0 %v353
    %422 = vmatpush2.bf16.msra.mxu0 %v352
    %423 = vmatprep.subr.bf16.mxu0 %v351
    %424 = vmatpush2.bf16.msra.mxu0 %v350
    %425 = vmatprep.subr.bf16.mxu0 %v349
    %426 = vmatpush2.bf16.msra.mxu0 %v348
    %427 = vmatprep.subr.bf16.mxu0 %v347
    %428 = vmatpush2.bf16.msra.mxu0 %v346
    %429 = vmatprep.subr.bf16.mxu0 %v345
    %430 = vmatpush2.bf16.msra.mxu0 %v344
    %431 = vmatprep.subr.bf16.mxu0 %v343
    %432 = vmatpush2.bf16.msra.mxu0 %v342
    %433 = vmatprep.mubr.bf16.mxu0 %v196
    %434 = vmatmul.mubr.bf16.gmra.mxu0 %v195
    %v435 = vpop.f32.mrf.mxu0
    %v436 = vadd.f32 %v394, %v435
    %v437 = vpop.f32.mrf.mxu0
    %v438 = vadd.f32 %v398, %v437
    %v439 = vpop.f32.mrf.mxu0
    %v440 = vpop.f32.mrf.mxu0
    %441 = vdwg.mxu0
    %v442 = vmax.f32 %v436, 0.0
    %v443 = vmax.f32 %v438, 0.0
    %v444 = vpack.c.bf16 %v442, %v442
    %v445 = vpack.c.bf16 %v443, %v443
    %v446 = vld [vmem:[%s5] sm:$0xf]
    %v447 = vld [vmem:[%s5 + $0x4] sm:$0xf]
    %v448 = vld [vmem:[%s5 + $0x8] sm:$0xf]
    %v449 = vld [vmem:[%s5 + $0xc] sm:$0xf]
    %v450 = vld [vmem:[%s5 + $0x10] sm:$0xf]
    %v451 = vld [vmem:[%s5 + $0x14] sm:$0xf]
    %v452 = vld [vmem:[%s5 + $0x18] sm:$0xf]
    %v453 = vld [vmem:[%s5 + $0x1c] sm:$0xf]
    %v454 = vld [vmem:[%s5 + $0x20] sm:$0xf]
    %v455 = vld [vmem:[%s5 + $0x24] sm:$0xf]
    %v456 = vld [vmem:[%s5 + $0x28] sm:$0xf]
    %v457 = vld [vmem:[%s5 + $0x2c] sm:$0xf]
    %v458 = vld [vmem:[%s5 + $0x30] sm:$0xf]
    %v459 = vld [vmem:[%s5 + $0x34] sm:$0xf]
    %v460 = vld [vmem:[%s5 + $0x38] sm:$0xf]
    %v461 = vld [vmem:[%s5 + $0x3c] sm:$0xf]
    %v462 = vld [vmem:[%s5 + $0x40] sm:$0xf]
    %v463 = vld [vmem:[%s5 + $0x44] sm:$0xf]
    %v464 = vld [vmem:[%s5 + $0x48] sm:$0xf]
    %v465 = vld [vmem:[%s5 + $0x4c] sm:$0xf]
    %v466 = vld [vmem:[%s5 + $0x50] sm:$0xf]
    %v467 = vld [vmem:[%s5 + $0x54] sm:$0xf]
    %v468 = vld [vmem:[%s5 + $0x58] sm:$0xf]
    %v469 = vld [vmem:[%s5 + $0x5c] sm:$0xf]
    %v470 = vld [vmem:[%s5 + $0x60] sm:$0xf]
    %v471 = vld [vmem:[%s5 + $0x64] sm:$0xf]
    %v472 = vld [vmem:[%s5 + $0x68] sm:$0xf]
    %v473 = vld [vmem:[%s5 + $0x6c] sm:$0xf]
    %v474 = vld [vmem:[%s5 + $0x70] sm:$0xf]
    %v475 = vld [vmem:[%s5 + $0x74] sm:$0xf]
    %v476 = vld [vmem:[%s5 + $0x78] sm:$0xf]
    %v477 = vld [vmem:[%s5 + $0x7c] sm:$0xf]
    %v478 = vld [vmem:[%s6] sm:$0x1]
    %v511 = vunpack.c.l.b16 %v446
    %v512 = vunpack.c.l.b16 %v447
    %v513 = vunpack.c.l.b16 %v448
    %v514 = vunpack.c.l.b16 %v449
    %v515 = vunpack.c.l.b16 %v450
    %v516 = vunpack.c.l.b16 %v451
    %v517 = vunpack.c.l.b16 %v452
    %v518 = vunpack.c.l.b16 %v453
    %v519 = vunpack.c.l.b16 %v454
    %v520 = vunpack.c.l.b16 %v455
    %v521 = vunpack.c.l.b16 %v456
    %v522 = vunpack.c.l.b16 %v457
    %v523 = vunpack.c.l.b16 %v458
    %v524 = vunpack.c.l.b16 %v459
    %v525 = vunpack.c.l.b16 %v460
    %v526 = vunpack.c.l.b16 %v461
    %v527 = vunpack.c.l.b16 %v462
    %v528 = vunpack.c.l.b16 %v463
    %v529 = vunpack.c.l.b16 %v464
    %v530 = vunpack.c.l.b16 %v465
    %v531 = vunpack.c.l.b16 %v466
    %v532 = vunpack.c.l.b16 %v467
    %v533 = vunpack.c.l.b16 %v468
    %v534 = vunpack.c.l.b16 %v469
    %v535 = vunpack.c.l.b16 %v470
    %v536 = vunpack.c.l.b16 %v471
    %v537 = vunpack.c.l.b16 %v472
    %v538 = vunpack.c.l.b16 %v473
    %v539 = vunpack.c.l.b16 %v474
    %v540 = vunpack.c.l.b16 %v475
    %v541 = vunpack.c.l.b16 %v476
    %v542 = vunpack.c.l.b16 %v477
    %v543 = vpack.c.b16 %v512, %v511
    %v544 = vpack.c.b16 %v514, %v513
    %v545 = vpack.c.b16 %v516, %v515
    %v546 = vpack.c.b16 %v518, %v517
    %v547 = vpack.c.b16 %v520, %v519
    %v548 = vpack.c.b16 %v522, %v521
    %v549 = vpack.c.b16 %v524, %v523
    %v550 = vpack.c.b16 %v526, %v525
    %v551 = vpack.c.b16 %v528, %v527
    %v552 = vpack.c.b16 %v530, %v529
    %v553 = vpack.c.b16 %v532, %v531
    %v554 = vpack.c.b16 %v534, %v533
    %v555 = vpack.c.b16 %v536, %v535
    %v556 = vpack.c.b16 %v538, %v537
    %v557 = vpack.c.b16 %v540, %v539
    %v558 = vpack.c.b16 %v542, %v541
    %575 = vmatprep.subr.bf16.mxu0 0
    %576 = vmatpush1.bf16.msra.mxu0 %v550
    %577 = vmatprep.subr.bf16.mxu0 0
    %578 = vmatpush1.bf16.msra.mxu0 %v549
    %579 = vmatprep.subr.bf16.mxu0 0
    %580 = vmatpush1.bf16.msra.mxu0 %v548
    %581 = vmatprep.subr.bf16.mxu0 0
    %582 = vmatpush1.bf16.msra.mxu0 %v547
    %583 = vmatprep.subr.bf16.mxu0 0
    %584 = vmatpush1.bf16.msra.mxu0 %v546
    %585 = vmatprep.subr.bf16.mxu0 0
    %586 = vmatpush1.bf16.msra.mxu0 %v545
    %587 = vmatprep.subr.bf16.mxu0 0
    %588 = vmatpush1.bf16.msra.mxu0 %v544
    %589 = vmatprep.subr.bf16.mxu0 0
    %590 = vmatpush1.bf16.msra.mxu0 %v543
    %591 = vmatprep.subr.bf16.mxu0 0
    %592 = vmatpush2.bf16.msra.mxu0 %v558
    %593 = vmatprep.subr.bf16.mxu0 0
    %594 = vmatpush2.bf16.msra.mxu0 %v557
    %595 = vmatprep.subr.bf16.mxu0 0
    %596 = vmatpush2.bf16.msra.mxu0 %v556
    %597 = vmatprep.subr.bf16.mxu0 0
    %598 = vmatpush2.bf16.msra.mxu0 %v555
    %599 = vmatprep.subr.bf16.mxu0 0
    %600 = vmatpush2.bf16.msra.mxu0 %v554
    %601 = vmatprep.subr.bf16.mxu0 0
    %602 = vmatpush2.bf16.msra.mxu0 %v553
    %603 = vmatprep.subr.bf16.mxu0 0
    %604 = vmatpush2.bf16.msra.mxu0 %v552
    %605 = vmatprep.subr.bf16.mxu0 0
    %606 = vmatpush2.bf16.msra.mxu0 %v551
    %607 = vmatprep.mubr.bf16.mxu0 %v445
    %608 = vmatmul.mubr.bf16.gmra.mxu0 %v444
    %v609 = vpop.f32.mrf.mxu0
    %v610 = vadd.f32 %v478, %v609
    %v611 = vpop.f32.mrf.mxu0
    %v612 = vpop.f32.mrf.mxu0
    %v613 = vpop.f32.mrf.mxu0
    %614 = vdwg.mxu0
    %vm615 = vcmask 516096
    %616 = vst.msk [vmem:[#allocation5] sm:$0x1] %vm615, %v610
    // Predicated region
    $region34: #{tpu_custom_call.1} parent=1 // pred_check
      _
    $region35: #{tpu_custom_call.1} parent=1 // pred_check_branch
      %618 = sbr.rel (0) target = $region37
    $region36: #{tpu_custom_call.1} parent=1 // pred_region
      %s620 = ssub.s32 16, 16
      %621 = vsyncadd [#allocation4], %s620
      %s623 = sshll.u32 [#allocation5], 4
      %s624 = int_to_ptr.vmem [resolvable:$true] %s623
      %626 = dma.vmem_to_hbm [thread:$0]  %s624, 16, %s7, [#allocation4]
    $region37: #{tpu_custom_call.1} parent=1 // pred_fallthru
      _
    // Predicated region
    $region38: #{tpu_custom_call.1} parent=1 // pred_check
      _
    $region39: #{tpu_custom_call.1} parent=1 // pred_check_branch
      %628 = sbr.rel (0) target = $region41
    $region40: #{tpu_custom_call.1} parent=1 // pred_region
      %629 = dma.done [#allocation4], 16
    $region41: #{tpu_custom_call.1} parent=1 // pred_fallthru
      _
    %630 = vsyncpa [#allocation3], 1
    %631 = vsyncpa [#allocation4], 1

</llo_original>
